<compile_context>
chip_gen: v6e
topology: v6e:2x2x1
jax: 0.10.0
libtpu: 0.0.40
codegen_flags: <defaults>
</compile_context>

<pallas_src>
import functools

import jax
import jax.numpy as jnp
from jax.experimental import pallas as pl
from jax.experimental.pallas import tpu as pltpu


def _round_up(x, m):
    return (x + m - 1) // m * m


_BIAS_ROWS = 16  # one bf16 (16, 128) sublane tile appended to the weight slab


# ----------------------------------------------------------------------------
# Kernel: fused actor+critic forward on one packed bf16 weight slab.
# ----------------------------------------------------------------------------
def _mlp_ac_fused_kernel(output_mul, num_actions, d_in, lw,
                         obs_ref, w_ref, out_ref):
    # obs tile [TB, d_in]; cast to bf16 in-register (VPU) to feed the bf16 MXU.
    obs = obs_ref[...].astype(jnp.bfloat16)

    # Static, tile-aligned views into the packed bf16 weight slab.
    w1 = w_ref[0:d_in, :]                                  # [d_in, lw]
    w2 = w_ref[d_in:d_in + lw, :]                          # [lw,   lw]
    w3 = w_ref[d_in + lw:d_in + 2 * lw, :]                 # [lw,   lw]
    bias_base = d_in + 2 * lw
    b_all = w_ref[bias_base:bias_base + _BIAS_ROWS, :].astype(jnp.float32)
    b1 = b_all[0:1, :]
    b2 = b_all[1:2, :]
    b3 = b_all[2:3, :]

    # Layer 1: actor/critic first layers fused into one 128-lane matmul.
    h1 = jnp.dot(obs, w1, preferred_element_type=jnp.float32) + b1
    h1 = jnp.maximum(h1, 0.0)                              # ReLU (f32 VPU)
    # Layer 2: block-diagonal (actor_h2 | critic_h1 | zero-pad).
    h2 = jnp.dot(h1.astype(jnp.bfloat16), w2,
                 preferred_element_type=jnp.float32) + b2
    h2 = jnp.maximum(h2, 0.0)                              # ReLU
    # Layer 3: block-diagonal output (mean lanes 0..A-1, value lane A).
    y = jnp.dot(h2.astype(jnp.bfloat16), w3,
                preferred_element_type=jnp.float32) + b3

    t = jnp.tanh(y)                                        # EUP, cheap
    if output_mul is not None:
        t = jnp.float32(output_mul) * t
    lane = jax.lax.broadcasted_iota(jnp.int32, y.shape, 1)
    # mean lanes get output_mul*tanh(y); value lane (and pad) keep raw y.
    out_ref[...] = jnp.where(lane < num_actions, t, y).astype(out_ref.dtype)


# ----------------------------------------------------------------------------
# One-time parameter packing (done outside the hot loop).
# ----------------------------------------------------------------------------
def pack_params(p, input_dim, num_actions, dtype=jnp.bfloat16):
    """Pack all weights AND biases into one [d_in + 2*lw + 16, lw] slab."""
    a1 = p["aw1"].shape[1]          # actor first hidden
    c1 = p["cw1"].shape[1]          # critic first hidden
    a2 = p["aw2"].shape[1]          # actor second hidden
    c2 = p["cw2"].shape[1]          # critic second hidden
    assert c2 == c1 and p["cw2"].shape[0] == c1, \
        "packing assumes critic_hidden2 maps first_hidden -> first_hidden"
    h1 = a1 + c1
    h2 = a2 + c2
    out = num_actions + 1
    lw = max(_round_up(h1, 128), _round_up(h2, 128), _round_up(out, 128))
    d_in_p = _round_up(input_dim, 16)   # bf16 sublane-tile aligned

    w1 = jnp.zeros((d_in_p, lw), jnp.float32)
    w1 = w1.at[:input_dim, :a1].set(p["aw1"])
    w1 = w1.at[:input_dim, a1:h1].set(p["cw1"])

    w2 = jnp.zeros((lw, lw), jnp.float32)
    w2 = w2.at[:a1, :a2].set(p["aw2"])
    w2 = w2.at[a1:h1, a2:h2].set(p["cw2"])

    w3 = jnp.zeros((lw, lw), jnp.float32)
    w3 = w3.at[:a2, :num_actions].set(p["aw3"])
    w3 = w3.at[a2:h2, num_actions:out].set(p["cw3"])

    bias = jnp.zeros((_BIAS_ROWS, lw), jnp.float32)
    bias = bias.at[0, :a1].set(p["ab1"][0]).at[0, a1:h1].set(p["cb1"][0])
    bias = bias.at[1, :a2].set(p["ab2"][0]).at[1, a2:h2].set(p["cb2"][0])
    bias = bias.at[2, :num_actions].set(p["ab3"][0])
    bias = bias.at[2, num_actions:out].set(p["cb3"][0])

    w_slab = jnp.concatenate([w1, w2, w3, bias], axis=0).astype(dtype)
    return w_slab


# ----------------------------------------------------------------------------
# Wrapper.
# ----------------------------------------------------------------------------
def mlp_model_continuous_forward(obs, w_slab, *, num_actions, output_mul=None,
                                 block_rows=512, return_packed=False):
    """Fused forward.

    Returns (mean [B, num_actions], value [B, 1]) or, with
    return_packed=True, the lane-dense [B, lw] slab (mean in lanes
    0..num_actions-1, value in lane num_actions) for downstream consumers.
    """
    B, D = obs.shape
    lw = w_slab.shape[1]
    d_in = w_slab.shape[0] - 2 * lw - _BIAS_ROWS

    if D != d_in:
        # TODO(synk): callers should pre-pad the feature dim once, outside the
        # hot loop, so this jnp.pad never runs per-step.
        obs = jnp.pad(obs, ((0, 0), (0, d_in - D)))

    # Pick the row block: whole array if small, else block_rows-row tiles.
    if B <= block_rows:
        tb, bp = B, B
    else:
        tb = block_rows
        bp = _round_up(B, tb)
        if bp != B:
            obs = jnp.pad(obs, ((0, bp - B), (0, 0)))
    grid = (pl.cdiv(bp, tb),)

    itemsize = jnp.dtype(w_slab.dtype).itemsize
    cost = pl.CostEstimate(
        flops=2 * bp * (d_in * lw + 2 * lw * lw),
        transcendentals=bp * lw,
        bytes_accessed=bp * d_in * 4 + w_slab.size * itemsize + bp * lw * 4,
    )

    out = pl.pallas_call(
        functools.partial(_mlp_ac_fused_kernel, output_mul, num_actions,
                          d_in, lw),
        grid=grid,
        in_specs=[
            pl.BlockSpec((tb, d_in), lambda i: (i, 0)),        # obs row block
            pl.BlockSpec(w_slab.shape, lambda i: (0, 0)),      # weights: resident
        ],
        out_specs=pl.BlockSpec((tb, lw), lambda i: (i, 0)),
        out_shape=jax.ShapeDtypeStruct((bp, lw), jnp.float32),
        compiler_params=pltpu.CompilerParams(
            dimension_semantics=("parallel",)),
        cost_estimate=cost,
    )(obs, w_slab)

    out = out[:B]
    if return_packed:
        return out
    mean = out[:, :num_actions]
    value = out[:, num_actions:num_actions + 1]
    return mean, value


# ----------------------------------------------------------------------------
# Synthetic init + pure-JAX reference (unpacked f32, matches PyTorch semantics).
# ----------------------------------------------------------------------------
def init_params(key, input_dim, actor_h1, actor_h2, num_actions, critic_h1):
    def linear(k, fan_in, fan_out):
        kw, kb = jax.random.split(k)
        bound = 1.0 / jnp.sqrt(jnp.float32(fan_in))
        W = jax.random.uniform(kw, (fan_in, fan_out), jnp.float32, -bound, bound)
        b = jax.random.uniform(kb, (1, fan_out), jnp.float32, -bound, bound)
        return W, b

    keys = jax.random.split(key, 6)
    aw1, ab1 = linear(keys[0], input_dim, actor_h1)
    aw2, ab2 = linear(keys[1], actor_h1, actor_h2)
    aw3, ab3 = linear(keys[2], actor_h2, num_actions)
    cw1, cb1 = linear(keys[3], input_dim, critic_h1)
    cw2, cb2 = linear(keys[4], critic_h1, critic_h1)
    cw3, cb3 = linear(keys[5], critic_h1, 1)
    return dict(aw1=aw1, ab1=ab1, aw2=aw2, ab2=ab2, aw3=aw3, ab3=ab3,
                cw1=cw1, cb1=cb1, cw2=cw2, cb2=cb2, cw3=cw3, cb3=cb3)


def reference_forward(obs, p, output_mul=None):
    x = jnp.maximum(obs @ p["aw1"] + p["ab1"], 0.0)
    x = jnp.maximum(x @ p["aw2"] + p["ab2"], 0.0)
    mean = jnp.tanh(x @ p["aw3"] + p["ab3"])
    if output_mul is not None:
        mean = output_mul * mean
    v = jnp.maximum(obs @ p["cw1"] + p["cb1"], 0.0)
    v = jnp.maximum(v @ p["cw2"] + p["cb2"], 0.0)
    value = v @ p["cw3"] + p["cb3"]
    return mean, value


if __name__ == "__main__":
    # model_config analogue:
    #   input_dim=32, actor: first_hidden=64, second_hidden=32,
    #   critic: first_hidden=64, num_actions=4, output_mul=2.0
    B = 512                       # batched rows; grid exercises 4 steps (TB=128)
    INPUT_DIM = 32
    ACTOR_H1, ACTOR_H2 = 64, 32
    CRITIC_H1 = 64
    NUM_ACTIONS = 4
    OUTPUT_MUL = 2.0

    key = jax.random.PRNGKey(0)
    k_obs, k_params = jax.random.split(key)
    obs = jax.random.normal(k_obs, (B, INPUT_DIM), jnp.float32)
    params = init_params(k_params, INPUT_DIM, ACTOR_H1, ACTOR_H2,
                         NUM_ACTIONS, CRITIC_H1)

    # Pack once (outside the hot loop): bf16 weight+bias slab.
    w_slab = pack_params(params, INPUT_DIM, NUM_ACTIONS)

    mean, value = mlp_model_continuous_forward(
        obs, w_slab, num_actions=NUM_ACTIONS, output_mul=OUTPUT_MUL,
        block_rows=128)
    mean = jax.block_until_ready(mean)
    value = jax.block_until_ready(value)

    ref_mean, ref_value = reference_forward(obs, params, output_mul=OUTPUT_MUL)
    assert mean.shape == (B, NUM_ACTIONS)
    assert value.shape == (B, 1)
    # bf16 weights -> loosened tolerance vs. the f32 reference.
    assert jnp.allclose(mean, ref_mean, atol=3e-2, rtol=3e-2)
    assert jnp.allclose(value, ref_value, atol=3e-2, rtol=3e-2)

    print("KERNEL_OK")
</pallas_src>

<mosaic_0001>
module attributes {stable_mosaic.version = 11 : i64} {
  func.func @_mlp_ac_fused_kernel(%arg0: i32, %arg1: memref<128x32xf32, #tpu.memory_space<vmem>>, %arg2: memref<304x128xbf16, #tpu.memory_space<vmem>>, %arg3: memref<128x128xf32, #tpu.memory_space<vmem>>) attributes {dimension_semantics = [#tpu.dimension_semantics<parallel>], iteration_bounds = array<i64: 4>, scalar_prefetch = 0 : i64, scratch_operands = 0 : i64, tpu.core_type = #tpu.core_type<tc>, window_params = [{transform_indices = @transform_0, window_bounds = array<i64: 128, 32>}, {pipeline_mode = #tpu.pipeline_mode<synchronous>, transform_indices = @transform_1, window_bounds = array<i64: 304, 128>}, {transform_indices = @transform_2, window_bounds = array<i64: 128, 128>}]} {
    %c0 = arith.constant 0 : index
    %c0_0 = arith.constant 0 : index
    %0 = vector.load %arg1[%c0, %c0_0] : memref<128x32xf32, #tpu.memory_space<vmem>>, vector<128x32xf32>
    %1 = arith.truncf %0 : vector<128x32xf32> to vector<128x32xbf16>
    %c0_1 = arith.constant 0 : index
    %c0_2 = arith.constant 0 : index
    %2 = vector.load %arg2[%c0_1, %c0_2] : memref<304x128xbf16, #tpu.memory_space<vmem>>, vector<32x128xbf16>
    %c32 = arith.constant 32 : index
    %c0_3 = arith.constant 0 : index
    %3 = vector.load %arg2[%c32, %c0_3] : memref<304x128xbf16, #tpu.memory_space<vmem>>, vector<128x128xbf16>
    %c160 = arith.constant 160 : index
    %c0_4 = arith.constant 0 : index
    %4 = vector.load %arg2[%c160, %c0_4] : memref<304x128xbf16, #tpu.memory_space<vmem>>, vector<128x128xbf16>
    %c288 = arith.constant 288 : index
    %c0_5 = arith.constant 0 : index
    %5 = vector.load %arg2[%c288, %c0_5] : memref<304x128xbf16, #tpu.memory_space<vmem>>, vector<16x128xbf16>
    %6 = arith.extf %5 : vector<16x128xbf16> to vector<16x128xf32>
    %7 = vector.extract_strided_slice %6 {offsets = [0, 0], sizes = [1, 128], strides = [1, 1]} : vector<16x128xf32> to vector<1x128xf32>
    %8 = vector.extract_strided_slice %6 {offsets = [1, 0], sizes = [1, 128], strides = [1, 1]} : vector<16x128xf32> to vector<1x128xf32>
    %9 = vector.extract_strided_slice %6 {offsets = [2, 0], sizes = [1, 128], strides = [1, 1]} : vector<16x128xf32> to vector<1x128xf32>
    %cst = arith.constant dense<0.000000e+00> : vector<128x128xf32>
    %10 = tpu.matmul %1, %2, %cst {dimension_numbers = #tpu.dot_dimension_numbers<[1], [0], [0], [1], [0, 0, 1, 1], [], []>} : vector<128x32xbf16>, vector<32x128xbf16>, vector<128x128xf32> -> vector<128x128xf32>
    %11 = vector.broadcast %7 : vector<1x128xf32> to vector<128x128xf32>
    %12 = arith.addf %10, %11 : vector<128x128xf32>
    %cst_6 = arith.constant 0.000000e+00 : f32
    %13 = vector.broadcast %cst_6 : f32 to vector<128x128xf32>
    %14 = arith.maximumf %12, %13 : vector<128x128xf32>
    %15 = arith.truncf %14 : vector<128x128xf32> to vector<128x128xbf16>
    %cst_7 = arith.constant dense<0.000000e+00> : vector<128x128xf32>
    %16 = tpu.matmul %15, %3, %cst_7 {dimension_numbers = #tpu.dot_dimension_numbers<[1], [0], [0], [1], [0, 0, 1, 1], [], []>} : vector<128x128xbf16>, vector<128x128xbf16>, vector<128x128xf32> -> vector<128x128xf32>
    %17 = vector.broadcast %8 : vector<1x128xf32> to vector<128x128xf32>
    %18 = arith.addf %16, %17 : vector<128x128xf32>
    %cst_8 = arith.constant 0.000000e+00 : f32
    %19 = vector.broadcast %cst_8 : f32 to vector<128x128xf32>
    %20 = arith.maximumf %18, %19 : vector<128x128xf32>
    %21 = arith.truncf %20 : vector<128x128xf32> to vector<128x128xbf16>
    %cst_9 = arith.constant dense<0.000000e+00> : vector<128x128xf32>
    %22 = tpu.matmul %21, %4, %cst_9 {dimension_numbers = #tpu.dot_dimension_numbers<[1], [0], [0], [1], [0, 0, 1, 1], [], []>} : vector<128x128xbf16>, vector<128x128xbf16>, vector<128x128xf32> -> vector<128x128xf32>
    %23 = vector.broadcast %9 : vector<1x128xf32> to vector<128x128xf32>
    %24 = arith.addf %22, %23 : vector<128x128xf32>
    %25 = math.tanh %24 : vector<128x128xf32>
    %cst_10 = arith.constant 2.000000e+00 : f32
    %26 = vector.broadcast %cst_10 : f32 to vector<128x128xf32>
    %27 = arith.mulf %26, %25 : vector<128x128xf32>
    %28 = tpu.iota {dimensions = array<i32: 1>} : vector<128x128xi32>
    %c4_i32 = arith.constant 4 : i32
    %29 = vector.broadcast %c4_i32 : i32 to vector<128x128xi32>
    %30 = arith.cmpi slt, %28, %29 : vector<128x128xi32>
    %31 = arith.select %30, %27, %24 : vector<128x128xi1>, vector<128x128xf32>
    %c0_11 = arith.constant 0 : index
    %c0_12 = arith.constant 0 : index
    %32 = vector.load %arg3[%c0_11, %c0_12] : memref<128x128xf32, #tpu.memory_space<vmem>>, vector<128x128xf32>
    tpu.vector_store %arg3[%c0_11, %c0_12], %31 {strides = array<i32>} : memref<128x128xf32, #tpu.memory_space<vmem>>, vector<128x128xf32>,
    return
  }
  func.func @transform_0(%arg0: i32) -> (i32, i32) {
    %c0_i32 = arith.constant 0 : i32
    %c0_i32_0 = arith.constant 0 : i32
    return %arg0, %c0_i32 : i32, i32
  }
  func.func @transform_1(%arg0: i32) -> (i32, i32) {
    %c0_i32 = arith.constant 0 : i32
    %c0_i32_0 = arith.constant 0 : i32
    %c0_i32_1 = arith.constant 0 : i32
    return %c0_i32, %c0_i32_0 : i32, i32
  }
  func.func @transform_2(%arg0: i32) -> (i32, i32) {
    %c0_i32 = arith.constant 0 : i32
    %c0_i32_0 = arith.constant 0 : i32
    return %arg0, %c0_i32 : i32, i32
  }
}

</mosaic_0001>

<llo_original>
// kernel: tpu_custom_call.1
$region0: #{tpu_custom_call.1}
  #allocation0 [shape = 'u32[]', space=smem, size = 0x4, offset = 0x4, fixed_abs, tag = 'smem constant byte address 0x4 - core index']
  #allocation1 [shape = 'u32[144,128]{1,0:T(1,128)}', space=vmem, size = 0x12000, scoped, tag = 'internal scratch']
  %s0 = inlined_call_operand.vmem [shape: f32[512,32], index: 0, kind: input, shape index: {}]
  %s1 = inlined_call_operand.vmem [shape: bf16[304,128], index: 1, kind: input, shape index: {}]
  %s2 = inlined_call_operand.hbm [shape: f32[512,128], index: 2, kind: output, shape index: {}]
  %s3 = sld [smem:[#allocation0]]
  $region41: #{tpu_custom_call.1} parent=0
    _
  %s5 = ssub.s32 1, %s3
  %s6 = scalar_select 0, %s5, %s3
  $region1: #{tpu_custom_call.1} parent=0
    #allocation2 [shape = 'u8[131072]{0}', space=vmem, size = 0x20000, scoped, tag = 'output window, operand 0']
    #allocation3 [shape = 's32[2]{0}', space=sflag, size = 0x8, scoped, tag = 'scoped memory for tpu_custom_call.1']
    %7 = vsyncpa [#allocation3], 0
    %s8 = scalar_lea.sflag [#allocation3], 1
    %9 = vsyncpa %s8, 0
    loop: start=0, step=1, limit=6
    $region2: #{tpu_custom_call.1} parent=1 // loop_pre_header
      _
    $region3: #{tpu_custom_call.1} parent=1 // loop_header
      %s11 = sphi 0, %s15
      %p12 = scmp.ge.s32.totalorder %s11, 6
      %s21 = sphi 0, %s23
      %s24 = sphi 0, %s21
      %s25 = sphi 0, %s24
      %s41 = sphi 0, %s25
      %s45 = sphi 0, %s45
      %s47 = sphi 0, %s45
      %s48 = sphi 0, %s47
      %s62 = sphi 0, %s48
      %s68 = sphi 0, %s70
      %s71 = sphi 0, %s68
      %s72 = sphi 0, %s71
      %s88 = sphi 0, %s72
    $region4: #{tpu_custom_call.1} parent=1 // loop_header_branch
      %14 = sbr.rel (%p12) target = $region8
    $region5: #{tpu_custom_call.1} parent=1 // loop_body
      %s16 = ssub.s32 %s11, 1
      %s17 = ssub.s32 %s11, 2
      %s18 = sadd.s32 %s11, 1
      %s19 = ssub.s32 %s11, %s18
      %p20 = scmp.eq.s32.totalorder %s19, 0
      %s22 = sadd.s32 %s21, 1
      %s23 = scalar_select %p20, %s21, %s22
      %p26 = pneg %p20
      %p27 = scmp.eq.s32.totalorder %s11, 3
      %p28 = por %p26, %p27
      %p29 = scmp.ne.s32.totalorder %s21, %s24
      %p30 = scmp.eq.s32.totalorder %s11, 0
      %p31 = por %p29, %p30
      %p32 = scmp.ne.s32.totalorder %s21, %s24
      %p33 = scmp.eq.s32.totalorder %s16, 3
      %p34 = por %p32, %p33
      %p35 = scmp.ne.s32.totalorder %s24, %s25
      %p36 = scmp.eq.s32.totalorder %s16, 0
      %p37 = por %p35, %p36
      %p38 = scmp.ne.s32.totalorder %s24, %s25
      %p39 = scmp.eq.s32.totalorder %s17, 3
      %p40 = por %p38, %p39
      %p42 = scmp.ne.s32.totalorder %s25, %s41
      %p43 = scmp.eq.s32.totalorder %s17, 0
      %p44 = por %p42, %p43
      %s46 = sadd.s32 %s45, 1
      %p49 = scmp.eq.s32.totalorder %s11, 3
      %p50 = scmp.ne.s32.totalorder %s45, %s47
      %p51 = scmp.eq.s32.totalorder %s11, 0
      %p52 = por %p50, %p51
      %p53 = scmp.ne.s32.totalorder %s45, %s47
      %p54 = scmp.eq.s32.totalorder %s16, 3
      %p55 = por %p53, %p54
      %p56 = scmp.ne.s32.totalorder %s47, %s48
      %p57 = scmp.eq.s32.totalorder %s16, 0
      %p58 = por %p56, %p57
      %p59 = scmp.ne.s32.totalorder %s47, %s48
      %p60 = scmp.eq.s32.totalorder %s17, 3
      %p61 = por %p59, %p60
      %p63 = scmp.ne.s32.totalorder %s48, %s62
      %p64 = scmp.eq.s32.totalorder %s17, 0
      %p65 = por %p63, %p64
      %s66 = ssub.s32 %s11, %s18
      %p67 = scmp.eq.s32.totalorder %s66, 0
      %s69 = sadd.s32 %s68, 1
      %s70 = scalar_select %p67, %s68, %s69
      %p73 = pneg %p67
      %p74 = scmp.eq.s32.totalorder %s11, 3
      %p75 = por %p73, %p74
      %p76 = scmp.ne.s32.totalorder %s68, %s71
      %p77 = scmp.eq.s32.totalorder %s11, 0
      %p78 = por %p76, %p77
      %p79 = scmp.ne.s32.totalorder %s68, %s71
      %p80 = scmp.eq.s32.totalorder %s16, 3
      %p81 = por %p79, %p80
      %p82 = scmp.ne.s32.totalorder %s71, %s72
      %p83 = scmp.eq.s32.totalorder %s16, 0
      %p84 = por %p82, %p83
      %p85 = scmp.ne.s32.totalorder %s71, %s72
      %p86 = scmp.eq.s32.totalorder %s17, 3
      %p87 = por %p85, %p86
      %p89 = scmp.ne.s32.totalorder %s72, %s88
      %p90 = scmp.eq.s32.totalorder %s17, 0
      %p91 = por %p89, %p90
      %p92 = scmp.le.s32.totalorder 1, %s11
      %p93 = scmp.lt.s32.totalorder %s11, 5
      %p94 = pnand %p92, %p93
      %p95 = pneg %p94
      // Predicated region
      $region9: #{tpu_custom_call.1} parent=5 // pred_check
        _
      $region10: #{tpu_custom_call.1} parent=5 // pred_check_branch
        %97 = sbr.rel (%p94) target = $region12
      $region11: #{tpu_custom_call.1} parent=5 // pred_region
        %s98 = ssub.s32 %s11, 1
        // Predicated region
        $region13: #{tpu_custom_call.1} parent=11 // pred_check
          %p99 = pneg %p58
        $region14: #{tpu_custom_call.1} parent=11 // pred_check_branch
          %101 = sbr.rel (%p99) target = $region16
        $region15: #{tpu_custom_call.1} parent=11 // pred_region
          _
        $region16: #{tpu_custom_call.1} parent=11 // pred_fallthru
          _
      $region12: #{tpu_custom_call.1} parent=5 // pred_fallthru
        _
      %p102 = scmp.lt.s32.totalorder %s11, 4
      // Predicated region
      $region17: #{tpu_custom_call.1} parent=5 // pred_check
        %p103 = pneg %p102
      $region18: #{tpu_custom_call.1} parent=5 // pred_check_branch
        %105 = sbr.rel (%p103) target = $region20
      $region19: #{tpu_custom_call.1} parent=5 // pred_region
        // Predicated region
        $region21: #{tpu_custom_call.1} parent=19 // pred_check
          %p106 = pneg %p31
        $region22: #{tpu_custom_call.1} parent=19 // pred_check_branch
          %108 = sbr.rel (%p106) target = $region24
        $region23: #{tpu_custom_call.1} parent=19 // pred_region
          %s109 = smul.u32 16, %s11
          %p110 = scmp.lt.s32.totalorder %s109, 63
          %s111 = scalar_select %p110, %s109, 63
          %s112 = smul.addr %s111, 8
          %s113 = scalar_lea.vmem %s0, %s112
          %s114 = smul.u32 16, %s11
        $region24: #{tpu_custom_call.1} parent=19 // pred_fallthru
          _
      $region20: #{tpu_custom_call.1} parent=5 // pred_fallthru
        _
      %p115 = scmp.le.s32.totalorder 1, %s11
      %p116 = scmp.lt.s32.totalorder %s11, 5
      %p117 = pnand %p115, %p116
      %p118 = pneg %p117
      // Predicated region
      $region25: #{tpu_custom_call.1} parent=5 // pred_check
        _
      $region26: #{tpu_custom_call.1} parent=5 // pred_check_branch
        %120 = sbr.rel (%p117) target = $region28
      $region27: #{tpu_custom_call.1} parent=5 // pred_region
        %s121 = ssub.s32 %s11, 1
        %s122 = smul.u32 16, %s16
        %p123 = scmp.lt.s32.totalorder %s122, 63
        %s124 = scalar_select %p123, %s122, 63
        %s125 = smul.addr %s124, 8
        %s126 = scalar_lea.vmem %s0, %s125
        %p127 = pneg %p37
        %p128 = pneg %p34
        %p129 = pneg %p58
        %p130 = pneg %p55
        %p131 = pneg %p84
        %p132 = pneg %p81
        %s133 = sand.u32 %s71, 1
        %s134 = scalar_lea.sflag [#allocation3], %s133
        %s135 = sand.u32 %s71, 1
        %s136 = smul.addr %s135, 128
        %s137 = scalar_lea.vmem [#allocation2], %s136
        %s138 = smul.u32 16, %s16
        %p139 = scmp.lt.s32.totalorder %s138, 63
        %s140 = scalar_select %p139, %s138, 63
        %s141 = smul.addr %s140, 8
        %s142 = scalar_lea.vmem %s0, %s141
        %s143 = smul.u32 16, %s16
        %s144 = smul.u32 16, %s16
        %v146 = vld [vmem:[%s142] sm:$0xff]
        %v147 = vld [vmem:[%s142 + $0x8] sm:$0xff]
        %v148 = vld [vmem:[%s142 + $0x10] sm:$0xff]
        %v149 = vld [vmem:[%s142 + $0x18] sm:$0xff]
        %v150 = vld [vmem:[%s142 + $0x20] sm:$0xff]
        %v151 = vld [vmem:[%s142 + $0x28] sm:$0xff]
        %v152 = vld [vmem:[%s142 + $0x30] sm:$0xff]
        %v153 = vld [vmem:[%s142 + $0x38] sm:$0xff]
        %v154 = vld [vmem:[%s142 + $0x40] sm:$0xff]
        %v155 = vld [vmem:[%s142 + $0x48] sm:$0xff]
        %v156 = vld [vmem:[%s142 + $0x50] sm:$0xff]
        %v157 = vld [vmem:[%s142 + $0x58] sm:$0xff]
        %v158 = vld [vmem:[%s142 + $0x60] sm:$0xff]
        %v159 = vld [vmem:[%s142 + $0x68] sm:$0xff]
        %v160 = vld [vmem:[%s142 + $0x70] sm:$0xff]
        %v161 = vld [vmem:[%s142 + $0x78] sm:$0xff]
        %v162 = vpack.c.bf16 %v147, %v146
        %v163 = vpack.c.bf16 %v149, %v148
        %v164 = vpack.c.bf16 %v151, %v150
        %v165 = vpack.c.bf16 %v153, %v152
        %v166 = vpack.c.bf16 %v155, %v154
        %v167 = vpack.c.bf16 %v157, %v156
        %v168 = vpack.c.bf16 %v159, %v158
        %v169 = vpack.c.bf16 %v161, %v160
        %v170 = vld [vmem:[%s1] sm:$0xf]
        %v171 = vld [vmem:[%s1 + $0x4] sm:$0xf]
        %v172 = vld [vmem:[%s1 + $0x8] sm:$0xf]
        %v173 = vld [vmem:[%s1 + $0xc] sm:$0xf]
        %v174 = vld [vmem:[%s1 + $0x10] sm:$0xf]
        %v175 = vld [vmem:[%s1 + $0x14] sm:$0xf]
        %v176 = vld [vmem:[%s1 + $0x18] sm:$0xf]
        %v177 = vld [vmem:[%s1 + $0x1c] sm:$0xf]
        %v178 = vld [vmem:[%s1 + $0x20] sm:$0xf]
        %v179 = vld [vmem:[%s1 + $0x24] sm:$0xf]
        %v180 = vld [vmem:[%s1 + $0x28] sm:$0xf]
        %v181 = vld [vmem:[%s1 + $0x2c] sm:$0xf]
        %v182 = vld [vmem:[%s1 + $0x30] sm:$0xf]
        %v183 = vld [vmem:[%s1 + $0x34] sm:$0xf]
        %v184 = vld [vmem:[%s1 + $0x38] sm:$0xf]
        %v185 = vld [vmem:[%s1 + $0x3c] sm:$0xf]
        %v186 = vld [vmem:[%s1 + $0x40] sm:$0xf]
        %v187 = vld [vmem:[%s1 + $0x44] sm:$0xf]
        %v188 = vld [vmem:[%s1 + $0x48] sm:$0xf]
        %v189 = vld [vmem:[%s1 + $0x4c] sm:$0xf]
        %v190 = vld [vmem:[%s1 + $0x50] sm:$0xf]
        %v191 = vld [vmem:[%s1 + $0x54] sm:$0xf]
        %v192 = vld [vmem:[%s1 + $0x58] sm:$0xf]
        %v193 = vld [vmem:[%s1 + $0x5c] sm:$0xf]
        %v194 = vld [vmem:[%s1 + $0x60] sm:$0xf]
        %v195 = vld [vmem:[%s1 + $0x64] sm:$0xf]
        %v196 = vld [vmem:[%s1 + $0x68] sm:$0xf]
        %v197 = vld [vmem:[%s1 + $0x6c] sm:$0xf]
        %v198 = vld [vmem:[%s1 + $0x70] sm:$0xf]
        %v199 = vld [vmem:[%s1 + $0x74] sm:$0xf]
        %v200 = vld [vmem:[%s1 + $0x78] sm:$0xf]
        %v201 = vld [vmem:[%s1 + $0x7c] sm:$0xf]
        %v202 = vld [vmem:[%s1 + $0x80] sm:$0xf]
        %v203 = vld [vmem:[%s1 + $0x84] sm:$0xf]
        %v204 = vld [vmem:[%s1 + $0x88] sm:$0xf]
        %v205 = vld [vmem:[%s1 + $0x8c] sm:$0xf]
        %v206 = vld [vmem:[%s1 + $0x90] sm:$0xf]
        %v207 = vunpack.c.l.bf16 %v206
        %v208 = vlaneseq
        %v209 = vshrl.u32 %v208, 7
        %v210 = vsub.s32 0, %v209
        %v211 = vrot.slane %v207, %v210
        %v216 = vunpack.c.l.b16 %v170
        %v217 = vunpack.c.l.b16 %v171
        %v218 = vunpack.c.l.b16 %v172
        %v219 = vunpack.c.l.b16 %v173
        %v220 = vpack.c.b16 %v217, %v216
        %v221 = vpack.c.b16 %v219, %v218
        %vm224 = vcmask 261120
        %v226 = vsel %vm224, %v162, 0
        %v229 = vsel %vm224, %v163, 0
        %v232 = vsel %vm224, %v164, 0
        %v235 = vsel %vm224, %v165, 0
        %v238 = vsel %vm224, %v166, 0
        %v241 = vsel %vm224, %v167, 0
        %v244 = vsel %vm224, %v168, 0
        %v247 = vsel %vm224, %v169, 0
        %249 = vmatprep.subr.bf16.mxu0 0
        %250 = vmatpush1.bf16.msra.mxu0 0
        %251 = vmatprep.subr.bf16.mxu0 0
        %252 = vmatpush1.bf16.msra.mxu0 0
        %253 = vmatprep.subr.bf16.mxu0 0
        %254 = vmatpush1.bf16.msra.mxu0 0
        %255 = vmatprep.subr.bf16.mxu0 0
        %256 = vmatpush1.bf16.msra.mxu0 0
        %257 = vmatprep.subr.bf16.mxu0 0
        %258 = vmatpush1.bf16.msra.mxu0 0
        %259 = vmatprep.subr.bf16.mxu0 0
        %260 = vmatpush1.bf16.msra.mxu0 0
        %261 = vmatprep.subr.bf16.mxu0 0
        %262 = vmatpush1.bf16.msra.mxu0 %v221
        %263 = vmatprep.subr.bf16.mxu0 0
        %264 = vmatpush1.bf16.msra.mxu0 %v220
        %265 = vmatprep.subr.bf16.mxu0 0
        %266 = vmatpush2.bf16.msra.mxu0 0
        %267 = vmatprep.subr.bf16.mxu0 0
        %268 = vmatpush2.bf16.msra.mxu0 0
        %269 = vmatprep.subr.bf16.mxu0 0
        %270 = vmatpush2.bf16.msra.mxu0 0
        %271 = vmatprep.subr.bf16.mxu0 0
        %272 = vmatpush2.bf16.msra.mxu0 0
        %273 = vmatprep.subr.bf16.mxu0 0
        %274 = vmatpush2.bf16.msra.mxu0 0
        %275 = vmatprep.subr.bf16.mxu0 0
        %276 = vmatpush2.bf16.msra.mxu0 0
        %277 = vmatprep.subr.bf16.mxu0 0
        %278 = vmatpush2.bf16.msra.mxu0 0
        %279 = vmatprep.subr.bf16.mxu0 0
        %280 = vmatpush2.bf16.msra.mxu0 0
        %281 = vmatprep.mubr.bf16.mxu0 0
        %282 = vmatmul.mubr.bf16.gmra.mxu0 %v226
        %v283 = vpop.f32.mrf.mxu0
        %v284 = vadd.f32 %v211, %v283
        %v285 = vpop.f32.mrf.mxu0
        %v286 = vpop.f32.mrf.mxu0
        %v287 = vadd.f32 %v211, %v286
        %v288 = vpop.f32.mrf.mxu0
        %289 = vmatprep.mubr.bf16.mxu0 0
        %290 = vmatmul.mubr.bf16.gmra.mxu0 %v229
        %v291 = vpop.f32.mrf.mxu0
        %v292 = vadd.f32 %v211, %v291
        %v293 = vpop.f32.mrf.mxu0
        %v294 = vpop.f32.mrf.mxu0
        %v295 = vadd.f32 %v211, %v294
        %v296 = vpop.f32.mrf.mxu0
        %297 = vmatprep.mubr.bf16.mxu0 0
        %298 = vmatmul.mubr.bf16.gmra.mxu0 %v232
        %v299 = vpop.f32.mrf.mxu0
        %v300 = vadd.f32 %v211, %v299
        %v301 = vpop.f32.mrf.mxu0
        %v302 = vpop.f32.mrf.mxu0
        %v303 = vadd.f32 %v211, %v302
        %v304 = vpop.f32.mrf.mxu0
        %305 = vmatprep.mubr.bf16.mxu0 0
        %306 = vmatmul.mubr.bf16.gmra.mxu0 %v235
        %v307 = vpop.f32.mrf.mxu0
        %v308 = vadd.f32 %v211, %v307
        %v309 = vpop.f32.mrf.mxu0
        %v310 = vpop.f32.mrf.mxu0
        %v311 = vadd.f32 %v211, %v310
        %v312 = vpop.f32.mrf.mxu0
        %313 = vmatprep.mubr.bf16.mxu0 0
        %314 = vmatmul.mubr.bf16.gmra.mxu0 %v238
        %v315 = vpop.f32.mrf.mxu0
        %v316 = vadd.f32 %v211, %v315
        %v317 = vpop.f32.mrf.mxu0
        %v318 = vpop.f32.mrf.mxu0
        %v319 = vadd.f32 %v211, %v318
        %v320 = vpop.f32.mrf.mxu0
        %321 = vmatprep.mubr.bf16.mxu0 0
        %322 = vmatmul.mubr.bf16.gmra.mxu0 %v241
        %v323 = vpop.f32.mrf.mxu0
        %v324 = vadd.f32 %v211, %v323
        %v325 = vpop.f32.mrf.mxu0
        %v326 = vpop.f32.mrf.mxu0
        %v327 = vadd.f32 %v211, %v326
        %v328 = vpop.f32.mrf.mxu0
        %329 = vmatprep.mubr.bf16.mxu0 0
        %330 = vmatmul.mubr.bf16.gmra.mxu0 %v244
        %v331 = vpop.f32.mrf.mxu0
        %v332 = vadd.f32 %v211, %v331
        %v333 = vpop.f32.mrf.mxu0
        %v334 = vpop.f32.mrf.mxu0
        %v335 = vadd.f32 %v211, %v334
        %v336 = vpop.f32.mrf.mxu0
        %337 = vmatprep.mubr.bf16.mxu0 0
        %338 = vmatmul.mubr.bf16.gmra.mxu0 %v247
        %v339 = vpop.f32.mrf.mxu0
        %v340 = vadd.f32 %v211, %v339
        %v341 = vpop.f32.mrf.mxu0
        %v342 = vpop.f32.mrf.mxu0
        %v343 = vadd.f32 %v211, %v342
        %v344 = vpop.f32.mrf.mxu0
        %345 = vdwg.mxu0
        %v346 = vmax.f32 %v284, 0.0
        %v347 = vmax.f32 %v287, 0.0
        %v348 = vmax.f32 %v292, 0.0
        %v349 = vmax.f32 %v295, 0.0
        %v350 = vmax.f32 %v300, 0.0
        %v351 = vmax.f32 %v303, 0.0
        %v352 = vmax.f32 %v308, 0.0
        %v353 = vmax.f32 %v311, 0.0
        %v354 = vmax.f32 %v316, 0.0
        %v355 = vmax.f32 %v319, 0.0
        %v356 = vmax.f32 %v324, 0.0
        %v357 = vmax.f32 %v327, 0.0
        %v358 = vmax.f32 %v332, 0.0
        %v359 = vmax.f32 %v335, 0.0
        %v360 = vmax.f32 %v340, 0.0
        %v361 = vmax.f32 %v343, 0.0
        %v362 = vpack.c.bf16 %v347, %v346
        %v363 = vpack.c.bf16 %v349, %v348
        %v364 = vpack.c.bf16 %v351, %v350
        %v365 = vpack.c.bf16 %v353, %v352
        %v366 = vpack.c.bf16 %v355, %v354
        %v367 = vpack.c.bf16 %v357, %v356
        %v368 = vpack.c.bf16 %v359, %v358
        %v369 = vpack.c.bf16 %v361, %v360
        %v370 = vlaneseq
        %v371 = vshrl.u32 %v370, 7
        %v372 = vsub.s32 1, %v371
        %v373 = vrot.slane %v207, %v372
        %v390 = vunpack.c.l.b16 %v174
        %v391 = vunpack.c.l.b16 %v175
        %v392 = vunpack.c.l.b16 %v176
        %v393 = vunpack.c.l.b16 %v177
        %v394 = vunpack.c.l.b16 %v178
        %v395 = vunpack.c.l.b16 %v179
        %v396 = vunpack.c.l.b16 %v180
        %v397 = vunpack.c.l.b16 %v181
        %v398 = vunpack.c.l.b16 %v182
        %v399 = vunpack.c.l.b16 %v183
        %v400 = vunpack.c.l.b16 %v184
        %v401 = vunpack.c.l.b16 %v185
        %v402 = vunpack.c.l.b16 %v186
        %v403 = vunpack.c.l.b16 %v187
        %v404 = vunpack.c.l.b16 %v188
        %v405 = vunpack.c.l.b16 %v189
        %v406 = vpack.c.b16 %v391, %v390
        %v407 = vpack.c.b16 %v393, %v392
        %v408 = vpack.c.b16 %v395, %v394
        %v409 = vpack.c.b16 %v397, %v396
        %v410 = vpack.c.b16 %v399, %v398
        %v411 = vpack.c.b16 %v401, %v400
        %v412 = vpack.c.b16 %v403, %v402
        %v413 = vpack.c.b16 %v405, %v404
        %422 = vmatprep.subr.bf16.mxu0 0
        %423 = vmatpush1.bf16.msra.mxu0 %v413
        %424 = vmatprep.subr.bf16.mxu0 0
        %425 = vmatpush1.bf16.msra.mxu0 %v412
        %426 = vmatprep.subr.bf16.mxu0 0
        %427 = vmatpush1.bf16.msra.mxu0 %v411
        %428 = vmatprep.subr.bf16.mxu0 0
        %429 = vmatpush1.bf16.msra.mxu0 %v410
        %430 = vmatprep.subr.bf16.mxu0 0
        %431 = vmatpush1.bf16.msra.mxu0 %v409
        %432 = vmatprep.subr.bf16.mxu0 0
        %433 = vmatpush1.bf16.msra.mxu0 %v408
        %434 = vmatprep.subr.bf16.mxu0 0
        %435 = vmatpush1.bf16.msra.mxu0 %v407
        %436 = vmatprep.subr.bf16.mxu0 0
        %437 = vmatpush1.bf16.msra.mxu0 %v406
        %438 = vmatprep.subr.bf16.mxu0 0
        %439 = vmatpush2.bf16.msra.mxu0 0
        %440 = vmatprep.subr.bf16.mxu0 0
        %441 = vmatpush2.bf16.msra.mxu0 0
        %442 = vmatprep.subr.bf16.mxu0 0
        %443 = vmatpush2.bf16.msra.mxu0 0
        %444 = vmatprep.subr.bf16.mxu0 0
        %445 = vmatpush2.bf16.msra.mxu0 0
        %446 = vmatprep.subr.bf16.mxu0 0
        %447 = vmatpush2.bf16.msra.mxu0 0
        %448 = vmatprep.subr.bf16.mxu0 0
        %449 = vmatpush2.bf16.msra.mxu0 0
        %450 = vmatprep.subr.bf16.mxu0 0
        %451 = vmatpush2.bf16.msra.mxu0 0
        %452 = vmatprep.subr.bf16.mxu0 0
        %453 = vmatpush2.bf16.msra.mxu0 0
        %454 = vmatprep.mubr.bf16.mxu0 0
        %455 = vmatmul.mubr.bf16.gmra.mxu0 %v362
        %v456 = vpop.f32.mrf.mxu0
        %v457 = vadd.f32 %v373, %v456
        %v458 = vpop.f32.mrf.mxu0
        %v459 = vpop.f32.mrf.mxu0
        %v460 = vadd.f32 %v373, %v459
        %v461 = vpop.f32.mrf.mxu0
        %462 = vmatprep.mubr.bf16.mxu0 0
        %463 = vmatmul.mubr.bf16.gmra.mxu0 %v363
        %v464 = vpop.f32.mrf.mxu0
        %v465 = vadd.f32 %v373, %v464
        %v466 = vpop.f32.mrf.mxu0
        %v467 = vpop.f32.mrf.mxu0
        %v468 = vadd.f32 %v373, %v467
        %v469 = vpop.f32.mrf.mxu0
        %470 = vmatprep.mubr.bf16.mxu0 0
        %471 = vmatmul.mubr.bf16.gmra.mxu0 %v364
        %v472 = vpop.f32.mrf.mxu0
        %v473 = vadd.f32 %v373, %v472
        %v474 = vpop.f32.mrf.mxu0
        %v475 = vpop.f32.mrf.mxu0
        %v476 = vadd.f32 %v373, %v475
        %v477 = vpop.f32.mrf.mxu0
        %478 = vmatprep.mubr.bf16.mxu0 0
        %479 = vmatmul.mubr.bf16.gmra.mxu0 %v365
        %v480 = vpop.f32.mrf.mxu0
        %v481 = vadd.f32 %v373, %v480
        %v482 = vpop.f32.mrf.mxu0
        %v483 = vpop.f32.mrf.mxu0
        %v484 = vadd.f32 %v373, %v483
        %v485 = vpop.f32.mrf.mxu0
        %486 = vmatprep.mubr.bf16.mxu0 0
        %487 = vmatmul.mubr.bf16.gmra.mxu0 %v366
        %v488 = vpop.f32.mrf.mxu0
        %v489 = vadd.f32 %v373, %v488
        %v490 = vpop.f32.mrf.mxu0
        %v491 = vpop.f32.mrf.mxu0
        %v492 = vadd.f32 %v373, %v491
        %v493 = vpop.f32.mrf.mxu0
        %494 = vmatprep.mubr.bf16.mxu0 0
        %495 = vmatmul.mubr.bf16.gmra.mxu0 %v367
        %v496 = vpop.f32.mrf.mxu0
        %v497 = vadd.f32 %v373, %v496
        %v498 = vpop.f32.mrf.mxu0
        %v499 = vpop.f32.mrf.mxu0
        %v500 = vadd.f32 %v373, %v499
        %v501 = vpop.f32.mrf.mxu0
        %502 = vmatprep.mubr.bf16.mxu0 0
        %503 = vmatmul.mubr.bf16.gmra.mxu0 %v368
        %v504 = vpop.f32.mrf.mxu0
        %v505 = vadd.f32 %v373, %v504
        %v506 = vpop.f32.mrf.mxu0
        %v507 = vpop.f32.mrf.mxu0
        %v508 = vadd.f32 %v373, %v507
        %v509 = vpop.f32.mrf.mxu0
        %510 = vmatprep.mubr.bf16.mxu0 0
        %511 = vmatmul.mubr.bf16.gmra.mxu0 %v369
        %v512 = vpop.f32.mrf.mxu0
        %v513 = vadd.f32 %v373, %v512
        %v514 = vpop.f32.mrf.mxu0
        %v515 = vpop.f32.mrf.mxu0
        %v516 = vadd.f32 %v373, %v515
        %v517 = vpop.f32.mrf.mxu0
        %518 = vdwg.mxu0
        %v519 = vmax.f32 %v457, 0.0
        %v520 = vmax.f32 %v460, 0.0
        %v521 = vmax.f32 %v465, 0.0
        %v522 = vmax.f32 %v468, 0.0
        %v523 = vmax.f32 %v473, 0.0
        %v524 = vmax.f32 %v476, 0.0
        %v525 = vmax.f32 %v481, 0.0
        %v526 = vmax.f32 %v484, 0.0
        %v527 = vmax.f32 %v489, 0.0
        %v528 = vmax.f32 %v492, 0.0
        %v529 = vmax.f32 %v497, 0.0
        %v530 = vmax.f32 %v500, 0.0
        %v531 = vmax.f32 %v505, 0.0
        %v532 = vmax.f32 %v508, 0.0
        %v533 = vmax.f32 %v513, 0.0
        %v534 = vmax.f32 %v516, 0.0
        %v535 = vpack.c.bf16 %v520, %v519
        %v536 = vpack.c.bf16 %v522, %v521
        %v537 = vpack.c.bf16 %v524, %v523
        %v538 = vpack.c.bf16 %v526, %v525
        %v539 = vpack.c.bf16 %v528, %v527
        %v540 = vpack.c.bf16 %v530, %v529
        %v541 = vpack.c.bf16 %v532, %v531
        %v542 = vpack.c.bf16 %v534, %v533
        %v543 = vlaneseq
        %v544 = vshrl.u32 %v543, 7
        %v545 = vsub.s32 2, %v544
        %v546 = vrot.slane %v207, %v545
        %v563 = vunpack.c.l.b16 %v190
        %v564 = vunpack.c.l.b16 %v191
        %v565 = vunpack.c.l.b16 %v192
        %v566 = vunpack.c.l.b16 %v193
        %v567 = vunpack.c.l.b16 %v194
        %v568 = vunpack.c.l.b16 %v195
        %v569 = vunpack.c.l.b16 %v196
        %v570 = vunpack.c.l.b16 %v197
        %v571 = vunpack.c.l.b16 %v198
        %v572 = vunpack.c.l.b16 %v199
        %v573 = vunpack.c.l.b16 %v200
        %v574 = vunpack.c.l.b16 %v201
        %v575 = vunpack.c.l.b16 %v202
        %v576 = vunpack.c.l.b16 %v203
        %v577 = vunpack.c.l.b16 %v204
        %v578 = vunpack.c.l.b16 %v205
        %v579 = vpack.c.b16 %v564, %v563
        %v580 = vpack.c.b16 %v566, %v565
        %v581 = vpack.c.b16 %v568, %v567
        %v582 = vpack.c.b16 %v570, %v569
        %v583 = vpack.c.b16 %v572, %v571
        %v584 = vpack.c.b16 %v574, %v573
        %v585 = vpack.c.b16 %v576, %v575
        %v586 = vpack.c.b16 %v578, %v577
        %595 = vmatprep.subr.bf16.mxu0 0
        %596 = vmatpush1.bf16.msra.mxu0 %v586
        %597 = vmatprep.subr.bf16.mxu0 0
        %598 = vmatpush1.bf16.msra.mxu0 %v585
        %599 = vmatprep.subr.bf16.mxu0 0
        %600 = vmatpush1.bf16.msra.mxu0 %v584
        %601 = vmatprep.subr.bf16.mxu0 0
        %602 = vmatpush1.bf16.msra.mxu0 %v583
        %603 = vmatprep.subr.bf16.mxu0 0
        %604 = vmatpush1.bf16.msra.mxu0 %v582
        %605 = vmatprep.subr.bf16.mxu0 0
        %606 = vmatpush1.bf16.msra.mxu0 %v581
        %607 = vmatprep.subr.bf16.mxu0 0
        %608 = vmatpush1.bf16.msra.mxu0 %v580
        %609 = vmatprep.subr.bf16.mxu0 0
        %610 = vmatpush1.bf16.msra.mxu0 %v579
        %611 = vmatprep.subr.bf16.mxu0 0
        %612 = vmatpush2.bf16.msra.mxu0 0
        %613 = vmatprep.subr.bf16.mxu0 0
        %614 = vmatpush2.bf16.msra.mxu0 0
        %615 = vmatprep.subr.bf16.mxu0 0
        %616 = vmatpush2.bf16.msra.mxu0 0
        %617 = vmatprep.subr.bf16.mxu0 0
        %618 = vmatpush2.bf16.msra.mxu0 0
        %619 = vmatprep.subr.bf16.mxu0 0
        %620 = vmatpush2.bf16.msra.mxu0 0
        %621 = vmatprep.subr.bf16.mxu0 0
        %622 = vmatpush2.bf16.msra.mxu0 0
        %623 = vmatprep.subr.bf16.mxu0 0
        %624 = vmatpush2.bf16.msra.mxu0 0
        %625 = vmatprep.subr.bf16.mxu0 0
        %626 = vmatpush2.bf16.msra.mxu0 0
        %627 = vmatprep.mubr.bf16.mxu0 0
        %628 = vmatmul.mubr.bf16.gmra.mxu0 %v535
        %v629 = vpop.f32.mrf.mxu0
        %v630 = vadd.f32 %v546, %v629
        %v631 = vpop.f32.mrf.mxu0
        %v632 = vpop.f32.mrf.mxu0
        %v633 = vadd.f32 %v546, %v632
        %v634 = vpop.f32.mrf.mxu0
        %635 = vmatprep.mubr.bf16.mxu0 0
        %636 = vmatmul.mubr.bf16.gmra.mxu0 %v536
        %v637 = vpop.f32.mrf.mxu0
        %v638 = vadd.f32 %v546, %v637
        %v639 = vpop.f32.mrf.mxu0
        %v640 = vpop.f32.mrf.mxu0
        %v641 = vadd.f32 %v546, %v640
        %v642 = vpop.f32.mrf.mxu0
        %643 = vmatprep.mubr.bf16.mxu0 0
        %644 = vmatmul.mubr.bf16.gmra.mxu0 %v537
        %v645 = vpop.f32.mrf.mxu0
        %v646 = vadd.f32 %v546, %v645
        %v647 = vpop.f32.mrf.mxu0
        %v648 = vpop.f32.mrf.mxu0
        %v649 = vadd.f32 %v546, %v648
        %v650 = vpop.f32.mrf.mxu0
        %651 = vmatprep.mubr.bf16.mxu0 0
        %652 = vmatmul.mubr.bf16.gmra.mxu0 %v538
        %v653 = vpop.f32.mrf.mxu0
        %v654 = vadd.f32 %v546, %v653
        %v655 = vpop.f32.mrf.mxu0
        %v656 = vpop.f32.mrf.mxu0
        %v657 = vadd.f32 %v546, %v656
        %v658 = vpop.f32.mrf.mxu0
        %659 = vmatprep.mubr.bf16.mxu0 0
        %660 = vmatmul.mubr.bf16.gmra.mxu0 %v539
        %v661 = vpop.f32.mrf.mxu0
        %v662 = vadd.f32 %v546, %v661
        %v663 = vpop.f32.mrf.mxu0
        %v664 = vpop.f32.mrf.mxu0
        %v665 = vadd.f32 %v546, %v664
        %v666 = vpop.f32.mrf.mxu0
        %667 = vmatprep.mubr.bf16.mxu0 0
        %668 = vmatmul.mubr.bf16.gmra.mxu0 %v540
        %v669 = vpop.f32.mrf.mxu0
        %v670 = vadd.f32 %v546, %v669
        %v671 = vpop.f32.mrf.mxu0
        %v672 = vpop.f32.mrf.mxu0
        %v673 = vadd.f32 %v546, %v672
        %v674 = vpop.f32.mrf.mxu0
        %675 = vmatprep.mubr.bf16.mxu0 0
        %676 = vmatmul.mubr.bf16.gmra.mxu0 %v541
        %v677 = vpop.f32.mrf.mxu0
        %v678 = vadd.f32 %v546, %v677
        %v679 = vpop.f32.mrf.mxu0
        %v680 = vpop.f32.mrf.mxu0
        %v681 = vadd.f32 %v546, %v680
        %v682 = vpop.f32.mrf.mxu0
        %683 = vmatprep.mubr.bf16.mxu0 0
        %684 = vmatmul.mubr.bf16.gmra.mxu0 %v542
        %v685 = vpop.f32.mrf.mxu0
        %v686 = vadd.f32 %v546, %v685
        %v687 = vpop.f32.mrf.mxu0
        %v688 = vpop.f32.mrf.mxu0
        %v689 = vadd.f32 %v546, %v688
        %v690 = vpop.f32.mrf.mxu0
        %691 = vdwg.mxu0
        %v692 = vtanh.pop %v630
        %v693 = vtanh.pop %v633
        %v694 = vtanh.pop %v638
        %v695 = vtanh.pop %v641
        %v696 = vtanh.pop %v646
        %v697 = vtanh.pop %v649
        %v698 = vtanh.pop %v654
        %v699 = vtanh.pop %v657
        %v700 = vtanh.pop %v662
        %v701 = vtanh.pop %v665
        %v702 = vtanh.pop %v670
        %v703 = vtanh.pop %v673
        %v704 = vtanh.pop %v678
        %v705 = vtanh.pop %v681
        %v706 = vtanh.pop %v686
        %v707 = vtanh.pop %v689
        %v708 = vmul.f32 %v692, 2.0
        %v709 = vmul.f32 %v693, 2.0
        %v710 = vmul.f32 %v694, 2.0
        %v711 = vmul.f32 %v695, 2.0
        %v712 = vmul.f32 %v696, 2.0
        %v713 = vmul.f32 %v697, 2.0
        %v714 = vmul.f32 %v698, 2.0
        %v715 = vmul.f32 %v699, 2.0
        %v716 = vmul.f32 %v700, 2.0
        %v717 = vmul.f32 %v701, 2.0
        %v718 = vmul.f32 %v702, 2.0
        %v719 = vmul.f32 %v703, 2.0
        %v720 = vmul.f32 %v704, 2.0
        %v721 = vmul.f32 %v705, 2.0
        %v722 = vmul.f32 %v706, 2.0
        %v723 = vmul.f32 %v707, 2.0
        %v724 = vlaneseq
        %v725 = vand.u32 %v724, 127
        %vm726 = vcmp.lt.s32.totalorder %v725, 4
        %v727 = vsel %vm726, %v708, %v630
        %v728 = vsel %vm726, %v709, %v633
        %v729 = vsel %vm726, %v710, %v638
        %v730 = vsel %vm726, %v711, %v641
        %v731 = vsel %vm726, %v712, %v646
        %v732 = vsel %vm726, %v713, %v649
        %v733 = vsel %vm726, %v714, %v654
        %v734 = vsel %vm726, %v715, %v657
        %v735 = vsel %vm726, %v716, %v662
        %v736 = vsel %vm726, %v717, %v665
        %v737 = vsel %vm726, %v718, %v670
        %v738 = vsel %vm726, %v719, %v673
        %v739 = vsel %vm726, %v720, %v678
        %v740 = vsel %vm726, %v721, %v681
        %v741 = vsel %vm726, %v722, %v686
        %v742 = vsel %vm726, %v723, %v689
        %743 = vst [vmem:[%s137] sm:$0xff] %v727
        %744 = vst [vmem:[%s137 + $0x8] sm:$0xff] %v728
        %745 = vst [vmem:[%s137 + $0x10] sm:$0xff] %v729
        %746 = vst [vmem:[%s137 + $0x18] sm:$0xff] %v730
        %747 = vst [vmem:[%s137 + $0x20] sm:$0xff] %v731
        %748 = vst [vmem:[%s137 + $0x28] sm:$0xff] %v732
        %749 = vst [vmem:[%s137 + $0x30] sm:$0xff] %v733
        %750 = vst [vmem:[%s137 + $0x38] sm:$0xff] %v734
        %751 = vst [vmem:[%s137 + $0x40] sm:$0xff] %v735
        %752 = vst [vmem:[%s137 + $0x48] sm:$0xff] %v736
        %753 = vst [vmem:[%s137 + $0x50] sm:$0xff] %v737
        %754 = vst [vmem:[%s137 + $0x58] sm:$0xff] %v738
        %755 = vst [vmem:[%s137 + $0x60] sm:$0xff] %v739
        %756 = vst [vmem:[%s137 + $0x68] sm:$0xff] %v740
        %757 = vst [vmem:[%s137 + $0x70] sm:$0xff] %v741
        %758 = vst [vmem:[%s137 + $0x78] sm:$0xff] %v742
        %s759 = sand.u32 %s71, 1
        %s760 = scalar_lea.sflag [#allocation3], %s759
        %s761 = sand.u32 %s71, 1
        %s762 = smul.addr %s761, 128
        %s763 = scalar_lea.vmem [#allocation2], %s762
        // Predicated region
        $region29: #{tpu_custom_call.1} parent=27 // pred_check
          %p764 = pneg %p81
        $region30: #{tpu_custom_call.1} parent=27 // pred_check_branch
          %766 = sbr.rel (%p764) target = $region32
        $region31: #{tpu_custom_call.1} parent=27 // pred_region
          %s767 = smul.u32 16, %s16
          %s769 = ssub.s32 2048, 2048
          %770 = vsyncadd %s760, %s769
          %s771 = smul.addr %s767, 128
          %s772 = scalar_lea.hbm %s2, %s771
          %s773 = sshll.u32 %s763, 4
          %s774 = int_to_ptr.vmem [resolvable:$true] %s773
          %779 = dma.vmem_to_hbm [thread:$0]  %s774, 2048, %s772, %s760, 128, 128, 8
        $region32: #{tpu_custom_call.1} parent=27 // pred_fallthru
          _
      $region28: #{tpu_custom_call.1} parent=5 // pred_fallthru
        _
      %p780 = scmp.le.s32.totalorder 2, %s11
      // Predicated region
      $region33: #{tpu_custom_call.1} parent=5 // pred_check
        %p781 = pneg %p780
      $region34: #{tpu_custom_call.1} parent=5 // pred_check_branch
        %783 = sbr.rel (%p781) target = $region36
      $region35: #{tpu_custom_call.1} parent=5 // pred_region
        %s784 = ssub.s32 %s11, 2
        // Predicated region
        $region37: #{tpu_custom_call.1} parent=35 // pred_check
          %p785 = pneg %p87
        $region38: #{tpu_custom_call.1} parent=35 // pred_check_branch
          %787 = sbr.rel (%p785) target = $region40
        $region39: #{tpu_custom_call.1} parent=35 // pred_region
          %s788 = sand.u32 %s72, 1
          %s789 = scalar_lea.sflag [#allocation3], %s788
          %s790 = sand.u32 %s72, 1
          %s791 = smul.addr %s790, 128
          %s792 = scalar_lea.vmem [#allocation2], %s791
          %793 = dma.done %s789, 2048
        $region40: #{tpu_custom_call.1} parent=35 // pred_fallthru
          _
      $region36: #{tpu_custom_call.1} parent=5 // pred_fallthru
        _
    $region6: #{tpu_custom_call.1} parent=1 // loop_footer
      %s15 = sadd.s32 1, %s11
    $region7: #{tpu_custom_call.1} parent=1 // loop_footer_branch
      %10 = sbr.rel target = $region3
    $region8: #{tpu_custom_call.1} parent=1 // loop_exit
      _
    %794 = vsyncpa [#allocation3], 1
    %s795 = scalar_lea.sflag [#allocation3], 1
    %796 = vsyncpa %s795, 1

</llo_original>
